<compile_context>
chip_gen: v7x
topology: tpu7x:2x2x1
jax: 0.10.0
libtpu: 0.0.40
codegen_flags: <defaults>
</compile_context>

<pallas_src>
import functools
import math

import jax
import jax.numpy as jnp
from jax import lax
from jax.experimental import pallas as pl
from jax.experimental.pallas import tpu as pltpu

_LANES = 128
_MAX_BLOCK_ROWS = 4096            # f32: 2 MiB per (block_rows, 128) input tile
_VMEM_LIMIT = 32 * 1024 * 1024    # fits raw mode's 3 double-buffered 2 MiB tiles


def _round_up(x, m):
    return ((x + m - 1) // m) * m


def _sublane(dtype):
    return {4: 8, 2: 16, 1: 32}.get(jnp.dtype(dtype).itemsize, 8)


def _compute_q(p, t, use_exp, scale):
    """Elementwise q-error on an f32 tile."""
    if use_exp:
        # exp(p*s+min)/exp(t*s+min) == exp(s*(p-t)); where() picks the >1 branch,
        # i.e. exp(|s*(p-t)|).  One EUP transcendental instead of 2 exps + divide.
        # NOTE: more numerically stable than the reference when exp() overflows.
        return jnp.exp(jnp.abs((p - t) * scale))
    p = p + 1e-08
    t = t + 1e-08
    num = jnp.maximum(p, t)
    den = jnp.minimum(p, t)
    # Exactly where(p>t, p/t, t/p); single reciprocal on the EUP slot.
    return num * pl.reciprocal(den, approx=False)


def _qerror_mean_kernel(p_ref, t_ref, out_ref, acc_ref, *, use_exp, scale,
                        inner, block_rows, n_true, first_masked_block,
                        mask_needed):
    part = pl.program_id(0)   # "parallel" axis (megacore split on v7x)
    i = pl.program_id(1)      # "arbitrary" reduction axis

    q = _compute_q(p_ref[...].astype(jnp.float32),
                   t_ref[...].astype(jnp.float32), use_exp, scale)

    @pl.when(i == 0)
    def _():
        acc_ref[...] = jnp.zeros_like(acc_ref)

    if not mask_needed:
        acc_ref[...] += jnp.sum(q, axis=0, keepdims=True)
    else:
        b = part * inner + i  # logical (unclamped) row-block index

        @pl.when(b < first_masked_block)
        def _():
            acc_ref[...] += jnp.sum(q, axis=0, keepdims=True)

        @pl.when(b >= first_masked_block)
        def _():
            # Exact mask of padded / out-of-bounds / clamped-duplicate elements.
            row = lax.broadcasted_iota(jnp.int32, q.shape, 0)
            lane = lax.broadcasted_iota(jnp.int32, q.shape, 1)
            flat = (b * block_rows + row) * _LANES + lane
            acc_ref[...] += jnp.sum(jnp.where(flat < n_true, q, 0.0),
                                    axis=0, keepdims=True)

    @pl.when(i == inner - 1)
    def _():
        out_ref[...] = jnp.sum(acc_ref[...]).reshape(1, 1, 1)


def _qerror_raw_kernel(p_ref, t_ref, q_ref, *, use_exp, scale):
    q = _compute_q(p_ref[...].astype(jnp.float32),
                   t_ref[...].astype(jnp.float32), use_exp, scale)
    q_ref[...] = q.astype(q_ref.dtype)


def qerror(preds, targets, out="mean", min_val=None, max_val=None, *,
           max_block_rows=_MAX_BLOCK_ROWS):
    """Pallas QError. preds/targets: same shape, any rank."""
    assert preds.shape == targets.shape
    orig_shape = preds.shape

    # Match PyTorch truthiness: `if min_val and max_val` (min_val=0.0 -> +1e-8 path).
    use_exp = bool(min_val and max_val)
    scale = (float(max_val) - float(min_val)) if use_exp else 0.0

    n_true = int(math.prod(orig_shape)) if orig_shape else 1
    if n_true == 0:
        if out == "mean":
            return jnp.array(jnp.nan, jnp.float32)
        return jnp.zeros(orig_shape, preds.dtype)

    # Lane-dense repack: flatten and view as (rows, 128).  Zero-copy when the
    # element count is already a multiple of 128; otherwise pad only to the next
    # 128 multiple (NOT to a block multiple -- ragged tail is masked in-kernel).
    p_flat = preds.reshape(-1)
    t_flat = targets.reshape(-1)
    n_flat = _round_up(n_true, _LANES)
    pad = n_flat - n_true
    if pad:
        p_flat = jnp.pad(p_flat, (0, pad))
        t_flat = jnp.pad(t_flat, (0, pad))
    rows = n_flat // _LANES
    p2 = p_flat.reshape(rows, _LANES)
    t2 = t_flat.reshape(rows, _LANES)

    sub = max(_sublane(preds.dtype), _sublane(targets.dtype))
    if rows <= max_block_rows:
        block_rows = rows                         # full-extent block: always legal
    else:
        block_rows = _round_up(max_block_rows, sub)
    total_blocks = -(-rows // block_rows)         # partial trailing block allowed

    if out == "mean":
        num_parts = 2 if total_blocks >= 2 else 1           # megacore on v7x
        inner = -(-total_blocks // num_parts)
        # First logical block that can contain an invalid element (padding,
        # ragged-block OOB, or duplicated clamped block).
        first_masked_block = n_true // (block_rows * _LANES)
        mask_needed = first_masked_block < num_parts * inner

        def in_map(p, i):
            return (jnp.minimum(p * inner + i, total_blocks - 1), 0)

        kernel = functools.partial(
            _qerror_mean_kernel, use_exp=use_exp, scale=scale, inner=inner,
            block_rows=block_rows, n_true=n_true,
            first_masked_block=first_masked_block, mask_needed=mask_needed)

        partials = pl.pallas_call(
            kernel,
            out_shape=jax.ShapeDtypeStruct((num_parts, 1, 1), jnp.float32),
            grid=(num_parts, inner),
            in_specs=[pl.BlockSpec((block_rows, _LANES), in_map),
                      pl.BlockSpec((block_rows, _LANES), in_map)],
            out_specs=pl.BlockSpec((1, 1, 1), lambda p, i: (p, 0, 0)),
            scratch_shapes=[pltpu.VMEM((1, _LANES), jnp.float32)],
            compiler_params=pltpu.CompilerParams(
                dimension_semantics=("parallel", "arbitrary"),
                vmem_limit_bytes=_VMEM_LIMIT),
        )(p2, t2)
        return jnp.sum(partials) / n_true

    elif out == "raw":
        kernel = functools.partial(_qerror_raw_kernel, use_exp=use_exp, scale=scale)
        raw = pl.pallas_call(
            kernel,
            out_shape=jax.ShapeDtypeStruct((rows, _LANES), preds.dtype),
            grid=(total_blocks,),
            in_specs=[pl.BlockSpec((block_rows, _LANES), lambda i: (i, 0)),
                      pl.BlockSpec((block_rows, _LANES), lambda i: (i, 0))],
            out_specs=pl.BlockSpec((block_rows, _LANES), lambda i: (i, 0)),
            compiler_params=pltpu.CompilerParams(
                dimension_semantics=("parallel",),
                vmem_limit_bytes=_VMEM_LIMIT),
        )(p2, t2)
        if pad:
            return raw.reshape(-1)[:n_true].reshape(orig_shape)
        return raw.reshape(orig_shape)
    else:
        raise ValueError(f"unknown out mode: {out}")


def _qerror_ref(preds, targets, out="mean", min_val=None, max_val=None):
    """Pure-JAX reference mirroring the PyTorch forward exactly."""
    p = preds.astype(jnp.float32)
    t = targets.astype(jnp.float32)
    if min_val and max_val:
        p = jnp.exp(p * (max_val - min_val) + min_val)
        t = jnp.exp(t * (max_val - min_val) + min_val)
    else:
        p = p + 1e-08
        t = t + 1e-08
    q = jnp.where(p > t, p / t, t / p)
    return jnp.mean(q) if out == "mean" else q


if __name__ == "__main__":
    key = jax.random.PRNGKey(0)
    k1, k2, k3, k4, k5, k6 = jax.random.split(key, 6)

    preds = jax.random.uniform(k1, (8, 128), dtype=jnp.float32)
    targets = jax.random.uniform(k2, (8, 128), dtype=jnp.float32)

    # 1) default (+1e-8) path, mean output (zero-copy 128-aligned fast path)
    m = qerror(preds, targets, out="mean")
    m_ref = _qerror_ref(preds, targets, out="mean")
    jax.block_until_ready(m)
    assert jnp.allclose(m, m_ref, rtol=1e-5, atol=1e-5), (m, m_ref)

    # 2) min_val=0.0 is falsy -> +1e-8 path (PyTorch truthiness), raw output
    r = qerror(preds, targets, out="raw", min_val=0.0, max_val=5.0)
    r_ref = _qerror_ref(preds, targets, out="raw", min_val=0.0, max_val=5.0)
    jax.block_until_ready(r)
    assert r.shape == preds.shape
    assert jnp.allclose(r, r_ref, rtol=1e-5, atol=1e-5)

    # 3) unnormalize (exp) path, mean + raw
    m2 = qerror(preds, targets, out="mean", min_val=1.0, max_val=5.0)
    m2_ref = _qerror_ref(preds, targets, out="mean", min_val=1.0, max_val=5.0)
    jax.block_until_ready(m2)
    assert jnp.allclose(m2, m2_ref, rtol=1e-5, atol=1e-5), (m2, m2_ref)

    r2 = qerror(preds, targets, out="raw", min_val=1.0, max_val=5.0)
    r2_ref = _qerror_ref(preds, targets, out="raw", min_val=1.0, max_val=5.0)
    jax.block_until_ready(r2)
    assert jnp.allclose(r2, r2_ref, rtol=1e-5, atol=1e-5)

    # 4) skinny shape: exercises 128-pad + exact in-kernel masking (no pad bias)
    sp = jax.random.uniform(k3, (37, 1), dtype=jnp.float32)
    st = jax.random.uniform(k4, (37, 1), dtype=jnp.float32)
    ms = qerror(sp, st, out="mean")
    ms_ref = _qerror_ref(sp, st, out="mean")
    rs = qerror(sp, st, out="raw", min_val=1.0, max_val=5.0)
    rs_ref = _qerror_ref(sp, st, out="raw", min_val=1.0, max_val=5.0)
    jax.block_until_ready((ms, rs))
    assert jnp.allclose(ms, ms_ref, rtol=1e-5, atol=1e-5), (ms, ms_ref)
    assert rs.shape == sp.shape
    assert jnp.allclose(rs, rs_ref, rtol=1e-5, atol=1e-5)

    # 5) multi-block grid with ragged trailing block + parallel mean split
    #    (small max_block_rows so the multi-block paths run on tiny data)
    mp = jax.random.uniform(k5, (100, 16), dtype=jnp.float32, minval=0.1, maxval=1.0)
    mt = jax.random.uniform(k6, (100, 16), dtype=jnp.float32, minval=0.1, maxval=1.0)
    mm = qerror(mp, mt, out="mean", max_block_rows=8)
    mm_ref = _qerror_ref(mp, mt, out="mean")
    rm = qerror(mp, mt, out="raw", min_val=1.0, max_val=5.0, max_block_rows=8)
    rm_ref = _qerror_ref(mp, mt, out="raw", min_val=1.0, max_val=5.0)
    jax.block_until_ready((mm, rm))
    assert jnp.allclose(mm, mm_ref, rtol=1e-5, atol=1e-5), (mm, mm_ref)
    assert rm.shape == mp.shape
    assert jnp.allclose(rm, rm_ref, rtol=1e-5, atol=1e-5)

    # 6) odd block count with parallel split (exercises clamped duplicate block)
    op = jax.random.uniform(k5, (24, 128), dtype=jnp.float32, minval=0.1, maxval=1.0)
    ot = jax.random.uniform(k6, (24, 128), dtype=jnp.float32, minval=0.1, maxval=1.0)
    om = qerror(op, ot, out="mean", max_block_rows=8)
    om_ref = _qerror_ref(op, ot, out="mean")
    jax.block_until_ready(om)
    assert jnp.allclose(om, om_ref, rtol=1e-5, atol=1e-5), (om, om_ref)

    # 7) bf16 inputs (dtype-aware sublane rounding, in-kernel upcast)
    bp = jax.random.uniform(k3, (16, 128), minval=0.1, maxval=1.0).astype(jnp.bfloat16)
    bt = jax.random.uniform(k4, (16, 128), minval=0.1, maxval=1.0).astype(jnp.bfloat16)
    bm = qerror(bp, bt, out="mean")
    bm_ref = _qerror_ref(bp, bt, out="mean")
    jax.block_until_ready(bm)
    assert jnp.allclose(bm, bm_ref, rtol=1e-2, atol=1e-2), (bm, bm_ref)

    print("KERNEL_OK")
</pallas_src>

<mosaic_0001>
module attributes {stable_mosaic.version = 11 : i64} {
  func.func @_qerror_mean_kernel(%arg0: i32, %arg1: i32, %arg2: memref<8x128xf32, #tpu.memory_space<vmem>>, %arg3: memref<8x128xf32, #tpu.memory_space<vmem>>, %arg4: memref<1x1x1xf32, #tpu.memory_space<vmem>>, %arg5: memref<1x128xf32, #tpu.memory_space<vmem>>) attributes {dimension_semantics = [#tpu.dimension_semantics<parallel>, #tpu.dimension_semantics<arbitrary>], iteration_bounds = array<i64: 1, 1>, scalar_prefetch = 0 : i64, scratch_operands = 1 : i64, tpu.core_type = #tpu.core_type<tc>, window_params = [{transform_indices = @transform_0, window_bounds = array<i64: 8, 128>}, {transform_indices = @transform_1, window_bounds = array<i64: 8, 128>}, {transform_indices = @transform_2, window_bounds = array<i64: 1, 1, 1>}]} {
    %c0 = arith.constant 0 : index
    %c0_0 = arith.constant 0 : index
    %0 = vector.load %arg2[%c0, %c0_0] : memref<8x128xf32, #tpu.memory_space<vmem>>, vector<8x128xf32>
    %c0_1 = arith.constant 0 : index
    %c0_2 = arith.constant 0 : index
    %1 = vector.load %arg3[%c0_1, %c0_2] : memref<8x128xf32, #tpu.memory_space<vmem>>, vector<8x128xf32>
    %cst = arith.constant 9.99999993E-9 : f32
    %2 = vector.broadcast %cst : f32 to vector<8x128xf32>
    %3 = arith.addf %0, %2 : vector<8x128xf32>
    %cst_3 = arith.constant 9.99999993E-9 : f32
    %4 = vector.broadcast %cst_3 : f32 to vector<8x128xf32>
    %5 = arith.addf %1, %4 : vector<8x128xf32>
    %6 = arith.maximumf %3, %5 : vector<8x128xf32>
    %7 = arith.minimumf %3, %5 : vector<8x128xf32>
    %8 = tpu.reciprocal %7 : vector<8x128xf32> -> vector<8x128xf32>
    %9 = arith.mulf %6, %8 : vector<8x128xf32>
    %c0_i32 = arith.constant 0 : i32
    %10 = arith.cmpi eq, %arg1, %c0_i32 : i32
    %11 = arith.extui %10 : i1 to i32
    %c0_i32_4 = arith.constant 0 : i32
    %12 = arith.cmpi ne, %11, %c0_i32_4 : i32
    scf.if %12 {
      %cst_12 = arith.constant 0.000000e+00 : f32
      %21 = vector.broadcast %cst_12 : f32 to vector<1x128xf32>
      %c0_13 = arith.constant 0 : index
      %c0_14 = arith.constant 0 : index
      %22 = vector.load %arg5[%c0_13, %c0_14] : memref<1x128xf32, #tpu.memory_space<vmem>>, vector<1x128xf32>
      tpu.vector_store %arg5[%c0_13, %c0_14], %21 {strides = array<i32>} : memref<1x128xf32, #tpu.memory_space<vmem>>, vector<1x128xf32>,
    } else {
    }
    %c0_5 = arith.constant 0 : index
    %c0_6 = arith.constant 0 : index
    %13 = vector.load %arg5[%c0_5, %c0_6] : memref<1x128xf32, #tpu.memory_space<vmem>>, vector<1x128xf32>
    %cst_7 = arith.constant dense<0.000000e+00> : vector<128xf32>
    %14 = vector.multi_reduction <add>, %9, %cst_7 [0] : vector<8x128xf32> to vector<128xf32>
    %15 = vector.shape_cast %14 : vector<128xf32> to vector<1x128xf32>
    %16 = arith.addf %13, %15 : vector<1x128xf32>
    %c0_8 = arith.constant 0 : index
    %c0_9 = arith.constant 0 : index
    %17 = vector.load %arg5[%c0_8, %c0_9] : memref<1x128xf32, #tpu.memory_space<vmem>>, vector<1x128xf32>
    tpu.vector_store %arg5[%c0_8, %c0_9], %16 {strides = array<i32>} : memref<1x128xf32, #tpu.memory_space<vmem>>, vector<1x128xf32>,
    %c0_i32_10 = arith.constant 0 : i32
    %18 = arith.cmpi eq, %arg1, %c0_i32_10 : i32
    %19 = arith.extui %18 : i1 to i32
    %c0_i32_11 = arith.constant 0 : i32
    %20 = arith.cmpi ne, %19, %c0_i32_11 : i32
    scf.if %20 {
      %c0_12 = arith.constant 0 : index
      %c0_13 = arith.constant 0 : index
      %21 = vector.load %arg5[%c0_12, %c0_13] : memref<1x128xf32, #tpu.memory_space<vmem>>, vector<1x128xf32>
      %22 = vector.shape_cast %21 : vector<1x128xf32> to vector<1x1x128xf32>
      %cst_14 = arith.constant dense<0.000000e+00> : vector<1xf32>
      %23 = vector.multi_reduction <add>, %22, %cst_14 [1, 2] : vector<1x1x128xf32> to vector<1xf32>
      %24 = vector.shape_cast %23 : vector<1xf32> to vector<1x1x1xf32>
      %25 = vector.extract %24[0, 0, 0] : f32 from vector<1x1x1xf32>
      %26 = vector.broadcast %25 : f32 to vector<1x1x1xf32>
      %c0_15 = arith.constant 0 : index
      %c0_16 = arith.constant 0 : index
      %c0_17 = arith.constant 0 : index
      %27 = vector.load %arg4[%c0_15, %c0_16, %c0_17] : memref<1x1x1xf32, #tpu.memory_space<vmem>>, vector<1x1x1xf32>
      tpu.vector_store %arg4[%c0_15, %c0_16, %c0_17], %26 {strides = array<i32>} : memref<1x1x1xf32, #tpu.memory_space<vmem>>, vector<1x1x1xf32>,
    } else {
    }
    return
  }
  func.func @transform_0(%arg0: i32, %arg1: i32) -> (i32, i32) {
    %c1_i32 = arith.constant 1 : i32
    %0 = arith.muli %arg0, %c1_i32 : i32
    %1 = arith.addi %0, %arg1 : i32
    %c0_i32 = arith.constant 0 : i32
    %2 = arith.minsi %1, %c0_i32 : i32
    %c0_i32_0 = arith.constant 0 : i32
    %c0_i32_1 = arith.constant 0 : i32
    return %2, %c0_i32_0 : i32, i32
  }
  func.func @transform_1(%arg0: i32, %arg1: i32) -> (i32, i32) {
    %c1_i32 = arith.constant 1 : i32
    %0 = arith.muli %arg0, %c1_i32 : i32
    %1 = arith.addi %0, %arg1 : i32
    %c0_i32 = arith.constant 0 : i32
    %2 = arith.minsi %1, %c0_i32 : i32
    %c0_i32_0 = arith.constant 0 : i32
    %c0_i32_1 = arith.constant 0 : i32
    return %2, %c0_i32_0 : i32, i32
  }
  func.func @transform_2(%arg0: i32, %arg1: i32) -> (i32, i32, i32) {
    %c0_i32 = arith.constant 0 : i32
    %c0_i32_0 = arith.constant 0 : i32
    %c0_i32_1 = arith.constant 0 : i32
    return %arg0, %c0_i32, %c0_i32_0 : i32, i32, i32
  }
}

</mosaic_0001>

<llo_original>
// kernel: tpu_custom_call.1
$region0: #{tpu_custom_call.1}
  #allocation0 [shape = 'u32[]', space=smem, size = 0x4, offset = 0x4, fixed_abs, tag = 'smem constant byte address 0x4 - core index']
  #allocation1 [shape = 'u32[144,128]{1,0:T(1,128)}', space=vmem, size = 0x12000, scoped, tag = 'internal scratch']
  #allocation2 [shape = 'f32[1,128]{1,0:T(1,128)}', space=vmem, size = 0x200, scoped, tag = 'scratch operand']
  %s0 = inlined_call_operand.hbm [shape: f32[8,128], index: 0, kind: input, shape index: {}]
  %s1 = inlined_call_operand.hbm [shape: f32[8,128], index: 1, kind: input, shape index: {}]
  %s2 = inlined_call_operand.hbm [shape: f32[1,1,1], index: 2, kind: output, shape index: {}]
  %s3 = sld [smem:[#allocation0]]
  $region34: #{tpu_custom_call.1} parent=0
    _
  %s5 = ssub.s32 1, %s3
  %s6 = scalar_select 0, %s5, %s3
  $region1: #{tpu_custom_call.1} parent=0
    #allocation3 [shape = 'u8[4096]{0}', space=vmem, size = 0x1000, scoped, tag = 'input window, operand 0, single buffered']
    #allocation4 [shape = 's32[1]{0}', space=sflag, size = 0x4, scoped, tag = 'scoped memory for tpu_custom_call.1']
    #allocation5 [shape = 's32[1]{0}', space=sflag, size = 0x4, scoped, tag = 'scoped memory for tpu_custom_call.1']
    #allocation6 [shape = 'u8[4096]{0}', space=vmem, size = 0x1000, scoped, tag = 'input window, operand 1, single buffered']
    #allocation7 [shape = 's32[1]{0}', space=sflag, size = 0x4, scoped, tag = 'scoped memory for tpu_custom_call.1']
    #allocation8 [shape = 'u8[512]{0}', space=vmem, size = 0x400, scoped, tag = 'output window, operand 0, single buffered']
    %7 = vsyncpa [#allocation4], 0
    %8 = vsyncpa [#allocation7], 0
    %9 = vsyncpa [#allocation5], 0
    // Predicated region
    $region2: #{tpu_custom_call.1} parent=1 // pred_check
      _
    $region3: #{tpu_custom_call.1} parent=1 // pred_check_branch
      %11 = sbr.rel (0) target = $region5
    $region4: #{tpu_custom_call.1} parent=1 // pred_region
      %s12 = sadd.s32 0, 0
      %p13 = scmp.lt.s32.totalorder %s12, 0
      %s14 = scalar_select %p13, %s12, 0
      %s16 = ssub.s32 128, 128
      %17 = vsyncadd [#allocation4], %s16
      %s18 = smul.addr %s14, 128
      %s19 = scalar_lea.hbm %s0, %s18
      %s21 = sshll.u32 [#allocation3], 4
      %s22 = int_to_ptr.vmem [resolvable:$true] %s21
      %24 = dma.hbm_to_vmem [thread:$0]  %s19, 128, %s22, [#allocation4]
    $region5: #{tpu_custom_call.1} parent=1 // pred_fallthru
      _
    // Predicated region
    $region6: #{tpu_custom_call.1} parent=1 // pred_check
      _
    $region7: #{tpu_custom_call.1} parent=1 // pred_check_branch
      %26 = sbr.rel (0) target = $region9
    $region8: #{tpu_custom_call.1} parent=1 // pred_region
      %s27 = sadd.s32 0, 0
      %p28 = scmp.lt.s32.totalorder %s27, 0
      %s29 = scalar_select %p28, %s27, 0
      %s31 = ssub.s32 128, 128
      %32 = vsyncadd [#allocation7], %s31
      %s33 = smul.addr %s29, 128
      %s34 = scalar_lea.hbm %s1, %s33
      %s36 = sshll.u32 [#allocation6], 4
      %s37 = int_to_ptr.vmem [resolvable:$true] %s36
      %39 = dma.hbm_to_vmem [thread:$0]  %s34, 128, %s37, [#allocation7]
    $region9: #{tpu_custom_call.1} parent=1 // pred_fallthru
      _
    // Predicated region
    $region10: #{tpu_custom_call.1} parent=1 // pred_check
      _
    $region11: #{tpu_custom_call.1} parent=1 // pred_check_branch
      %41 = sbr.rel (0) target = $region13
    $region12: #{tpu_custom_call.1} parent=1 // pred_region
      %42 = dma.done [#allocation4], 128
    $region13: #{tpu_custom_call.1} parent=1 // pred_fallthru
      _
    // Predicated region
    $region14: #{tpu_custom_call.1} parent=1 // pred_check
      _
    $region15: #{tpu_custom_call.1} parent=1 // pred_check_branch
      %44 = sbr.rel (0) target = $region17
    $region16: #{tpu_custom_call.1} parent=1 // pred_region
      %45 = dma.done [#allocation7], 128
    $region17: #{tpu_custom_call.1} parent=1 // pred_fallthru
      _
    %s46 = sadd.s32 0, 0
    %p47 = scmp.lt.s32.totalorder %s46, 0
    %s48 = scalar_select %p47, %s46, 0
    %s49 = sadd.s32 0, 0
    %p50 = scmp.lt.s32.totalorder %s49, 0
    %s51 = scalar_select %p50, %s49, 0
    %v52 = vld [vmem:[#allocation3] sm:$0xff]
    %v53 = vld [vmem:[#allocation6] sm:$0xff]
    %v54 = vadd.f32 %v52, 1e-08
    %v55 = vadd.f32 %v53, 1e-08
    %v56 = vmax.f32 %v54, %v55
    %v57 = vmin.f32 %v54, %v55
    %v58 = vrcp.pop %v57
    %v59 = vmul.f32 %v56, %v58
    %p60 = scmp.eq.s32.totalorder 0, 0
    // Predicated region
    $region18: #{tpu_custom_call.1} parent=1 // pred_check
      %p61 = pneg %p60
    $region19: #{tpu_custom_call.1} parent=1 // pred_check_branch
      %63 = sbr.rel (%p61) target = $region21
    $region20: #{tpu_custom_call.1} parent=1 // pred_region
      %64 = vst [vmem:[#allocation2] sm:$0x1] 0.0
    $region21: #{tpu_custom_call.1} parent=1 // pred_fallthru
      _
    %v65 = vld [vmem:[#allocation2] sm:$0x1]
    %v66 = vrot.slane %v59, 4
    %v67 = vadd.f32 %v59, %v66
    %v68 = vrot.slane %v67, 2
    %v69 = vadd.f32 %v67, %v68
    %v70 = vrot.slane %v69, 1
    %v71 = vadd.f32 %v69, %v70
    %v72 = vadd.f32 %v65, %v71
    %73 = vst [vmem:[#allocation2] sm:$0x1] %v72
    // Predicated region
    $region22: #{tpu_custom_call.1} parent=1 // pred_check
      %p74 = pneg %p60
    $region23: #{tpu_custom_call.1} parent=1 // pred_check_branch
      %76 = sbr.rel (%p74) target = $region25
    $region24: #{tpu_custom_call.1} parent=1 // pred_region
      %v77 = vld [vmem:[#allocation2] sm:$0x1]
      %vm78 = vcmask 1040384
      %v79 = vsel %vm78, %v77, 0.0
      %80 = vadd.xlane.f32.xlu0 %v79
      %v81 = vpop.xlane.xlu0 %80
      %v82 = vrot.slane %v81, 4
      %v83 = vadd.f32 %v81, %v82
      %v84 = vrot.slane %v83, 2
      %v85 = vadd.f32 %v83, %v84
      %v86 = vrot.slane %v85, 1
      %v87 = vadd.f32 %v85, %v86
      %s88 = vtos %v87
      %v89 = vstv %s88
      %vm90 = vcmask 0
      %91 = vst.msk [vmem:[#allocation8] sm:$0x1] %vm90, %v89
    $region25: #{tpu_custom_call.1} parent=1 // pred_fallthru
      _
    // Predicated region
    $region26: #{tpu_custom_call.1} parent=1 // pred_check
      _
    $region27: #{tpu_custom_call.1} parent=1 // pred_check_branch
      %93 = sbr.rel (0) target = $region29
    $region28: #{tpu_custom_call.1} parent=1 // pred_region
      %s95 = ssub.s32 16, 16
      %96 = vsyncadd [#allocation5], %s95
      %s98 = sshll.u32 [#allocation8], 4
      %s99 = int_to_ptr.vmem [resolvable:$true] %s98
      %101 = dma.vmem_to_hbm [thread:$0]  %s99, 16, %s2, [#allocation5]
    $region29: #{tpu_custom_call.1} parent=1 // pred_fallthru
      _
    // Predicated region
    $region30: #{tpu_custom_call.1} parent=1 // pred_check
      _
    $region31: #{tpu_custom_call.1} parent=1 // pred_check_branch
      %103 = sbr.rel (0) target = $region33
    $region32: #{tpu_custom_call.1} parent=1 // pred_region
      %104 = dma.done [#allocation5], 16
    $region33: #{tpu_custom_call.1} parent=1 // pred_fallthru
      _
    %105 = vsyncpa [#allocation4], 1
    %106 = vsyncpa [#allocation7], 1
    %107 = vsyncpa [#allocation5], 1

</llo_original>
